<compile_context>
chip_gen: v7x
topology: tpu7x:2x2x1
jax: 0.10.0
libtpu: 0.0.40
codegen_flags: <defaults>
</compile_context>

<pallas_src>
import functools

import jax
import jax.numpy as jnp
from jax.experimental import pallas as pl
from jax.experimental.pallas import tpu as pltpu

_LANE = 128
_SUBLANE = 8
_EPS = 1e-3


def _round_up(x, m):
    return ((x + m - 1) // m) * m


def _ln_silu(y, gamma, beta, n_features):
    # LayerNorm over the *real* feature width (padded lanes are exact zeros, so
    # summing over the padded width and dividing by n_features is exact), then
    # SiLU.  var = E[y^2] - mu^2 lets the two XLU reductions issue together.
    inv_n = 1.0 / float(n_features)
    mu = jnp.sum(y, axis=-1, keepdims=True) * inv_n
    ex2 = jnp.sum(y * y, axis=-1, keepdims=True) * inv_n
    var = ex2 - mu * mu
    y = (y - mu) * jax.lax.rsqrt(var + _EPS) * gamma + beta
    return y * jax.nn.sigmoid(y)  # SiLU


def mlp_kernel(x_ref, w0_ref, g0_ref, b0_ref, w1_ref, g1_ref, b1_ref,
               wm_ref, bm_ref, mean_ref, *, units):
    # layer 0: Linear(no bias, bf16 MXU / f32 acc) -> LayerNorm -> SiLU
    h = jnp.dot(x_ref[...], w0_ref[...], preferred_element_type=jnp.float32)
    h = _ln_silu(h, g0_ref[...], b0_ref[...], units)

    # layer 1
    h = jnp.dot(h.astype(w1_ref.dtype), w1_ref[...],
                preferred_element_type=jnp.float32)
    h = _ln_silu(h, g1_ref[...], b1_ref[...], units)

    # mean head: Linear(with bias), then tanh (dist == 'normal' branch)
    m = jnp.dot(h.astype(wm_ref.dtype), wm_ref[...],
                preferred_element_type=jnp.float32) + bm_ref[...]
    mean_ref[...] = jnp.tanh(m).astype(mean_ref.dtype)


@functools.partial(jax.jit, static_argnames=("block_b",))
def mlp_forward(x, params, block_b=None):
    w0, g0, b0, w1, g1, b1, wm, bm = params
    B, inp_dim = x.shape
    units = w0.shape[1]
    out_dim = wm.shape[1]

    # ---- lane-dense feature padding (zero pad to 128-lane multiples) ----
    inp_p = _round_up(inp_dim, _LANE)
    units_p = _round_up(units, _LANE)
    out_p = _round_up(out_dim, _LANE)

    # ---- batch tiling: one big M tile; pad B to the tile multiple ----
    # On v7x pass block_b = B // 2 so the "parallel" grid axis has >= 2 steps
    # and shards across the two TensorCores.
    if block_b is None:
        block_b = _round_up(B, _SUBLANE) if B <= 512 else 256
    B_p = _round_up(B, block_b)
    grid = (B_p // block_b,)

    f32, bf16 = jnp.float32, jnp.bfloat16

    def pad2(a, rows, cols, dtype):
        return jnp.pad(a, ((0, rows - a.shape[0]),
                           (0, cols - a.shape[1]))).astype(dtype)

    # bf16 matmul operands, f32 LayerNorm scales / bias.
    x_p = pad2(x, B_p, inp_p, bf16)
    w0_p = pad2(w0, inp_p, units_p, bf16)
    w1_p = pad2(w1, units_p, units_p, bf16)
    wm_p = pad2(wm, units_p, out_p, bf16)
    g0_p = pad2(g0, 1, units_p, f32)
    b0_p = pad2(b0, 1, units_p, f32)
    g1_p = pad2(g1, 1, units_p, f32)
    b1_p = pad2(b1, 1, units_p, f32)
    bm_p = pad2(bm, 1, out_p, f32)

    # Constant-index blocks: the pipeline DMAs them once and never rotates
    # them.  When scaling units up, add pipeline_mode=pl.Buffered(1) here and
    # set vmem_limit_bytes for v7x's 64 MiB VMEM / 32 MiB scoped default.
    full = lambda shape: pl.BlockSpec(shape, lambda i: (0, 0))

    kernel = functools.partial(mlp_kernel, units=units)

    mean_p = pl.pallas_call(
        kernel,
        out_shape=jax.ShapeDtypeStruct((B_p, out_p), f32),
        grid_spec=pltpu.PrefetchScalarGridSpec(
            num_scalar_prefetch=0,
            grid=grid,
            in_specs=[
                pl.BlockSpec((block_b, inp_p), lambda i: (i, 0)),  # x tile
                full((inp_p, units_p)),    # W0
                full((1, units_p)),        # gamma0
                full((1, units_p)),        # beta0
                full((units_p, units_p)),  # W1
                full((1, units_p)),        # gamma1
                full((1, units_p)),        # beta1
                full((units_p, out_p)),    # W_mean
                full((1, out_p)),          # b_mean
            ],
            out_specs=pl.BlockSpec((block_b, out_p), lambda i: (i, 0)),
        ),
        compiler_params=pltpu.CompilerParams(
            dimension_semantics=("parallel",)),
    )(x_p, w0_p, g0_p, b0_p, w1_p, g1_p, b1_p, wm_p, bm_p)

    return mean_p[:B, :out_dim]


def make_params(key, inp_dim, units, out_dim):
    # Deterministic synthetic init (stand-in for tools.weight_init /
    # tools.uniform_weight_init — shapes match the PyTorch module).
    ks = jax.random.split(key, 4)
    w0 = jax.random.normal(ks[0], (inp_dim, units), jnp.float32) / jnp.sqrt(inp_dim)
    w1 = jax.random.normal(ks[1], (units, units), jnp.float32) / jnp.sqrt(units)
    wm = jax.random.normal(ks[2], (units, out_dim), jnp.float32) / jnp.sqrt(units)
    bm = 0.01 * jax.random.normal(ks[3], (1, out_dim), jnp.float32)
    g0 = jnp.ones((1, units), jnp.float32)
    b0 = jnp.zeros((1, units), jnp.float32)
    g1 = jnp.ones((1, units), jnp.float32)
    b1 = jnp.zeros((1, units), jnp.float32)
    return (w0, g0, b0, w1, g1, b1, wm, bm)


def reference_forward_f32(x, params):
    # Pure f32 reference of the PyTorch forward (dist='normal' mean branch).
    w0, g0, b0, w1, g1, b1, wm, bm = params

    def ln(y, g, b, eps=_EPS):
        mu = y.mean(-1, keepdims=True)
        var = ((y - mu) ** 2).mean(-1, keepdims=True)
        return (y - mu) / jnp.sqrt(var + eps) * g + b

    h = x @ w0
    h = ln(h, g0, b0)
    h = h * jax.nn.sigmoid(h)
    h = h @ w1
    h = ln(h, g1, b1)
    h = h * jax.nn.sigmoid(h)
    return jnp.tanh(h @ wm + bm)


def reference_forward_bf16(x, params):
    # Same math as the kernel: bf16 matmul inputs, f32 accumulation / LN.
    w0, g0, b0, w1, g1, b1, wm, bm = params
    bf16 = jnp.bfloat16
    units = w0.shape[1]

    def ln_silu(y, g, b, n):
        mu = jnp.sum(y, -1, keepdims=True) / n
        ex2 = jnp.sum(y * y, -1, keepdims=True) / n
        y = (y - mu) * jax.lax.rsqrt(ex2 - mu * mu + _EPS) * g + b
        return y * jax.nn.sigmoid(y)

    h = jnp.dot(x.astype(bf16), w0.astype(bf16),
                preferred_element_type=jnp.float32)
    h = ln_silu(h, g0, b0, units)
    h = jnp.dot(h.astype(bf16), w1.astype(bf16),
                preferred_element_type=jnp.float32)
    h = ln_silu(h, g1, b1, units)
    m = jnp.dot(h.astype(bf16), wm.astype(bf16),
                preferred_element_type=jnp.float32) + bm
    return jnp.tanh(m)


if __name__ == "__main__":
    # Module config: inp_dim=32, shape=(16,), layers=2, units=64,
    # act='SiLU', norm=True, dist='normal', std=1.0, min_std=0.1, max_std=1.0
    B, inp_dim, units, out_dim = 16, 32, 64, 16
    min_std, max_std, std_fixed = 0.1, 1.0, 1.0

    key = jax.random.PRNGKey(0)
    kx, kp = jax.random.split(key)
    x = jax.random.normal(kx, (B, inp_dim), jnp.float32)
    params = make_params(kp, inp_dim, units, out_dim)

    mean = mlp_forward(x, params)
    jax.block_until_ready(mean)

    # 'normal' dist parameters (std is a fixed scalar, computed in plain JAX).
    std = (max_std - min_std) * jax.nn.sigmoid(std_fixed + 2.0) + min_std
    # TODO(synk): the torchd.Normal / tools.ContDist wrapper objects have no
    # Pallas equivalent; we return the distribution parameters (tanh(mean), std).

    ref_bf16 = reference_forward_bf16(x, params)
    ref_f32 = reference_forward_f32(x, params)

    assert mean.shape == (B, out_dim)
    assert jnp.allclose(mean, ref_bf16, atol=2e-3, rtol=2e-3), \
        "mismatch vs bf16-matmul reference"
    assert jnp.allclose(mean, ref_f32, atol=5e-2), \
        "mismatch vs f32 reference"
    jax.block_until_ready(std)
    print("KERNEL_OK")
</pallas_src>

<mosaic_0001>
module attributes {stable_mosaic.version = 11 : i64} {
  func.func @mlp_kernel(%arg0: i32, %arg1: memref<16x128xbf16, #tpu.memory_space<vmem>>, %arg2: memref<128x128xbf16, #tpu.memory_space<vmem>>, %arg3: memref<1x128xf32, #tpu.memory_space<vmem>>, %arg4: memref<1x128xf32, #tpu.memory_space<vmem>>, %arg5: memref<128x128xbf16, #tpu.memory_space<vmem>>, %arg6: memref<1x128xf32, #tpu.memory_space<vmem>>, %arg7: memref<1x128xf32, #tpu.memory_space<vmem>>, %arg8: memref<128x128xbf16, #tpu.memory_space<vmem>>, %arg9: memref<1x128xf32, #tpu.memory_space<vmem>>, %arg10: memref<16x128xf32, #tpu.memory_space<vmem>>) attributes {dimension_semantics = [#tpu.dimension_semantics<parallel>], iteration_bounds = array<i64: 1>, scalar_prefetch = 0 : i64, scratch_operands = 0 : i64, tpu.core_type = #tpu.core_type<tc>, window_params = [{transform_indices = @transform_0, window_bounds = array<i64: 16, 128>}, {pipeline_mode = #tpu.pipeline_mode<synchronous>, transform_indices = @transform_1, window_bounds = array<i64: 128, 128>}, {pipeline_mode = #tpu.pipeline_mode<synchronous>, transform_indices = @transform_2, window_bounds = array<i64: 1, 128>}, {pipeline_mode = #tpu.pipeline_mode<synchronous>, transform_indices = @transform_3, window_bounds = array<i64: 1, 128>}, {pipeline_mode = #tpu.pipeline_mode<synchronous>, transform_indices = @transform_4, window_bounds = array<i64: 128, 128>}, {pipeline_mode = #tpu.pipeline_mode<synchronous>, transform_indices = @transform_5, window_bounds = array<i64: 1, 128>}, {pipeline_mode = #tpu.pipeline_mode<synchronous>, transform_indices = @transform_6, window_bounds = array<i64: 1, 128>}, {pipeline_mode = #tpu.pipeline_mode<synchronous>, transform_indices = @transform_7, window_bounds = array<i64: 128, 128>}, {pipeline_mode = #tpu.pipeline_mode<synchronous>, transform_indices = @transform_8, window_bounds = array<i64: 1, 128>}, {transform_indices = @transform_9, window_bounds = array<i64: 16, 128>}]} {
    %c0 = arith.constant 0 : index
    %c0_0 = arith.constant 0 : index
    %0 = vector.load %arg1[%c0, %c0_0] : memref<16x128xbf16, #tpu.memory_space<vmem>>, vector<16x128xbf16>
    %c0_1 = arith.constant 0 : index
    %c0_2 = arith.constant 0 : index
    %1 = vector.load %arg2[%c0_1, %c0_2] : memref<128x128xbf16, #tpu.memory_space<vmem>>, vector<128x128xbf16>
    %cst = arith.constant dense<0.000000e+00> : vector<16x128xf32>
    %2 = tpu.matmul %0, %1, %cst {dimension_numbers = #tpu.dot_dimension_numbers<[1], [0], [0], [1], [0, 0, 1, 1], [], []>} : vector<16x128xbf16>, vector<128x128xbf16>, vector<16x128xf32> -> vector<16x128xf32>
    %c0_3 = arith.constant 0 : index
    %c0_4 = arith.constant 0 : index
    %3 = vector.load %arg3[%c0_3, %c0_4] : memref<1x128xf32, #tpu.memory_space<vmem>>, vector<1x128xf32>
    %c0_5 = arith.constant 0 : index
    %c0_6 = arith.constant 0 : index
    %4 = vector.load %arg4[%c0_5, %c0_6] : memref<1x128xf32, #tpu.memory_space<vmem>>, vector<1x128xf32>
    %cst_7 = arith.constant dense<0.000000e+00> : vector<16xf32>
    %5 = vector.multi_reduction <add>, %2, %cst_7 [1] : vector<16x128xf32> to vector<16xf32>
    %6 = vector.shape_cast %5 : vector<16xf32> to vector<16x1xf32>
    %cst_8 = arith.constant 1.562500e-02 : f32
    %7 = vector.broadcast %cst_8 : f32 to vector<16x1xf32>
    %8 = arith.mulf %6, %7 : vector<16x1xf32>
    %9 = arith.mulf %2, %2 : vector<16x128xf32>
    %cst_9 = arith.constant dense<0.000000e+00> : vector<16xf32>
    %10 = vector.multi_reduction <add>, %9, %cst_9 [1] : vector<16x128xf32> to vector<16xf32>
    %11 = vector.shape_cast %10 : vector<16xf32> to vector<16x1xf32>
    %cst_10 = arith.constant 1.562500e-02 : f32
    %12 = vector.broadcast %cst_10 : f32 to vector<16x1xf32>
    %13 = arith.mulf %11, %12 : vector<16x1xf32>
    %14 = arith.mulf %8, %8 : vector<16x1xf32>
    %15 = arith.subf %13, %14 : vector<16x1xf32>
    %16 = vector.broadcast %8 : vector<16x1xf32> to vector<16x128xf32>
    %17 = arith.subf %2, %16 : vector<16x128xf32>
    %cst_11 = arith.constant 1.000000e-03 : f32
    %18 = vector.broadcast %cst_11 : f32 to vector<16x1xf32>
    %19 = arith.addf %15, %18 : vector<16x1xf32>
    %20 = math.rsqrt %19 : vector<16x1xf32>
    %21 = vector.broadcast %20 : vector<16x1xf32> to vector<16x128xf32>
    %22 = arith.mulf %17, %21 : vector<16x128xf32>
    %23 = vector.broadcast %3 : vector<1x128xf32> to vector<16x128xf32>
    %24 = arith.mulf %22, %23 : vector<16x128xf32>
    %25 = vector.broadcast %4 : vector<1x128xf32> to vector<16x128xf32>
    %26 = arith.addf %24, %25 : vector<16x128xf32>
    %27 = arith.negf %26 : vector<16x128xf32>
    %28 = math.exp %27 : vector<16x128xf32>
    %cst_12 = arith.constant 1.000000e+00 : f32
    %29 = vector.broadcast %cst_12 : f32 to vector<16x128xf32>
    %30 = arith.addf %29, %28 : vector<16x128xf32>
    %31 = arith.divf %29, %30 : vector<16x128xf32>
    %32 = arith.mulf %26, %31 : vector<16x128xf32>
    %33 = arith.truncf %32 : vector<16x128xf32> to vector<16x128xbf16>
    %c0_13 = arith.constant 0 : index
    %c0_14 = arith.constant 0 : index
    %34 = vector.load %arg5[%c0_13, %c0_14] : memref<128x128xbf16, #tpu.memory_space<vmem>>, vector<128x128xbf16>
    %cst_15 = arith.constant dense<0.000000e+00> : vector<16x128xf32>
    %35 = tpu.matmul %33, %34, %cst_15 {dimension_numbers = #tpu.dot_dimension_numbers<[1], [0], [0], [1], [0, 0, 1, 1], [], []>} : vector<16x128xbf16>, vector<128x128xbf16>, vector<16x128xf32> -> vector<16x128xf32>
    %c0_16 = arith.constant 0 : index
    %c0_17 = arith.constant 0 : index
    %36 = vector.load %arg6[%c0_16, %c0_17] : memref<1x128xf32, #tpu.memory_space<vmem>>, vector<1x128xf32>
    %c0_18 = arith.constant 0 : index
    %c0_19 = arith.constant 0 : index
    %37 = vector.load %arg7[%c0_18, %c0_19] : memref<1x128xf32, #tpu.memory_space<vmem>>, vector<1x128xf32>
    %cst_20 = arith.constant dense<0.000000e+00> : vector<16xf32>
    %38 = vector.multi_reduction <add>, %35, %cst_20 [1] : vector<16x128xf32> to vector<16xf32>
    %39 = vector.shape_cast %38 : vector<16xf32> to vector<16x1xf32>
    %cst_21 = arith.constant 1.562500e-02 : f32
    %40 = vector.broadcast %cst_21 : f32 to vector<16x1xf32>
    %41 = arith.mulf %39, %40 : vector<16x1xf32>
    %42 = arith.mulf %35, %35 : vector<16x128xf32>
    %cst_22 = arith.constant dense<0.000000e+00> : vector<16xf32>
    %43 = vector.multi_reduction <add>, %42, %cst_22 [1] : vector<16x128xf32> to vector<16xf32>
    %44 = vector.shape_cast %43 : vector<16xf32> to vector<16x1xf32>
    %cst_23 = arith.constant 1.562500e-02 : f32
    %45 = vector.broadcast %cst_23 : f32 to vector<16x1xf32>
    %46 = arith.mulf %44, %45 : vector<16x1xf32>
    %47 = arith.mulf %41, %41 : vector<16x1xf32>
    %48 = arith.subf %46, %47 : vector<16x1xf32>
    %49 = vector.broadcast %41 : vector<16x1xf32> to vector<16x128xf32>
    %50 = arith.subf %35, %49 : vector<16x128xf32>
    %cst_24 = arith.constant 1.000000e-03 : f32
    %51 = vector.broadcast %cst_24 : f32 to vector<16x1xf32>
    %52 = arith.addf %48, %51 : vector<16x1xf32>
    %53 = math.rsqrt %52 : vector<16x1xf32>
    %54 = vector.broadcast %53 : vector<16x1xf32> to vector<16x128xf32>
    %55 = arith.mulf %50, %54 : vector<16x128xf32>
    %56 = vector.broadcast %36 : vector<1x128xf32> to vector<16x128xf32>
    %57 = arith.mulf %55, %56 : vector<16x128xf32>
    %58 = vector.broadcast %37 : vector<1x128xf32> to vector<16x128xf32>
    %59 = arith.addf %57, %58 : vector<16x128xf32>
    %60 = arith.negf %59 : vector<16x128xf32>
    %61 = math.exp %60 : vector<16x128xf32>
    %cst_25 = arith.constant 1.000000e+00 : f32
    %62 = vector.broadcast %cst_25 : f32 to vector<16x128xf32>
    %63 = arith.addf %62, %61 : vector<16x128xf32>
    %64 = arith.divf %62, %63 : vector<16x128xf32>
    %65 = arith.mulf %59, %64 : vector<16x128xf32>
    %66 = arith.truncf %65 : vector<16x128xf32> to vector<16x128xbf16>
    %c0_26 = arith.constant 0 : index
    %c0_27 = arith.constant 0 : index
    %67 = vector.load %arg8[%c0_26, %c0_27] : memref<128x128xbf16, #tpu.memory_space<vmem>>, vector<128x128xbf16>
    %cst_28 = arith.constant dense<0.000000e+00> : vector<16x128xf32>
    %68 = tpu.matmul %66, %67, %cst_28 {dimension_numbers = #tpu.dot_dimension_numbers<[1], [0], [0], [1], [0, 0, 1, 1], [], []>} : vector<16x128xbf16>, vector<128x128xbf16>, vector<16x128xf32> -> vector<16x128xf32>
    %c0_29 = arith.constant 0 : index
    %c0_30 = arith.constant 0 : index
    %69 = vector.load %arg9[%c0_29, %c0_30] : memref<1x128xf32, #tpu.memory_space<vmem>>, vector<1x128xf32>
    %70 = vector.broadcast %69 : vector<1x128xf32> to vector<16x128xf32>
    %71 = arith.addf %68, %70 : vector<16x128xf32>
    %72 = math.tanh %71 : vector<16x128xf32>
    %c0_31 = arith.constant 0 : index
    %c0_32 = arith.constant 0 : index
    %73 = vector.load %arg10[%c0_31, %c0_32] : memref<16x128xf32, #tpu.memory_space<vmem>>, vector<16x128xf32>
    tpu.vector_store %arg10[%c0_31, %c0_32], %72 {strides = array<i32>} : memref<16x128xf32, #tpu.memory_space<vmem>>, vector<16x128xf32>,
    return
  }
  func.func @transform_0(%arg0: i32) -> (i32, i32) {
    %c0_i32 = arith.constant 0 : i32
    %c0_i32_0 = arith.constant 0 : i32
    return %arg0, %c0_i32 : i32, i32
  }
  func.func @transform_1(%arg0: i32) -> (i32, i32) {
    %c0_i32 = arith.constant 0 : i32
    %c0_i32_0 = arith.constant 0 : i32
    %c0_i32_1 = arith.constant 0 : i32
    return %c0_i32, %c0_i32_0 : i32, i32
  }
  func.func @transform_2(%arg0: i32) -> (i32, i32) {
    %c0_i32 = arith.constant 0 : i32
    %c0_i32_0 = arith.constant 0 : i32
    %c0_i32_1 = arith.constant 0 : i32
    return %c0_i32, %c0_i32_0 : i32, i32
  }
  func.func @transform_3(%arg0: i32) -> (i32, i32) {
    %c0_i32 = arith.constant 0 : i32
    %c0_i32_0 = arith.constant 0 : i32
    %c0_i32_1 = arith.constant 0 : i32
    return %c0_i32, %c0_i32_0 : i32, i32
  }
  func.func @transform_4(%arg0: i32) -> (i32, i32) {
    %c0_i32 = arith.constant 0 : i32
    %c0_i32_0 = arith.constant 0 : i32
    %c0_i32_1 = arith.constant 0 : i32
    return %c0_i32, %c0_i32_0 : i32, i32
  }
  func.func @transform_5(%arg0: i32) -> (i32, i32) {
    %c0_i32 = arith.constant 0 : i32
    %c0_i32_0 = arith.constant 0 : i32
    %c0_i32_1 = arith.constant 0 : i32
    return %c0_i32, %c0_i32_0 : i32, i32
  }
  func.func @transform_6(%arg0: i32) -> (i32, i32) {
    %c0_i32 = arith.constant 0 : i32
    %c0_i32_0 = arith.constant 0 : i32
    %c0_i32_1 = arith.constant 0 : i32
    return %c0_i32, %c0_i32_0 : i32, i32
  }
  func.func @transform_7(%arg0: i32) -> (i32, i32) {
    %c0_i32 = arith.constant 0 : i32
    %c0_i32_0 = arith.constant 0 : i32
    %c0_i32_1 = arith.constant 0 : i32
    return %c0_i32, %c0_i32_0 : i32, i32
  }
  func.func @transform_8(%arg0: i32) -> (i32, i32) {
    %c0_i32 = arith.constant 0 : i32
    %c0_i32_0 = arith.constant 0 : i32
    %c0_i32_1 = arith.constant 0 : i32
    return %c0_i32, %c0_i32_0 : i32, i32
  }
  func.func @transform_9(%arg0: i32) -> (i32, i32) {
    %c0_i32 = arith.constant 0 : i32
    %c0_i32_0 = arith.constant 0 : i32
    return %arg0, %c0_i32 : i32, i32
  }
}

</mosaic_0001>

<llo_original>
// kernel: mlp_forward.1
$region0: #{mlp_forward.1}
  #allocation0 [shape = 'u32[]', space=smem, size = 0x4, offset = 0x4, fixed_abs, tag = 'smem constant byte address 0x4 - core index']
  #allocation1 [shape = 'u32[144,128]{1,0:T(1,128)}', space=vmem, size = 0x12000, scoped, tag = 'internal scratch']
  %s0 = inlined_call_operand.vmem [shape: bf16[16,128], index: 0, kind: input, shape index: {}]
  %s1 = inlined_call_operand.vmem [shape: bf16[128,128], index: 1, kind: input, shape index: {}]
  %s2 = inlined_call_operand.vmem [shape: f32[1,128], index: 2, kind: input, shape index: {}]
  %s3 = inlined_call_operand.vmem [shape: f32[1,128], index: 3, kind: input, shape index: {}]
  %s4 = inlined_call_operand.vmem [shape: bf16[128,128], index: 4, kind: input, shape index: {}]
  %s5 = inlined_call_operand.vmem [shape: f32[1,128], index: 5, kind: input, shape index: {}]
  %s6 = inlined_call_operand.vmem [shape: f32[1,128], index: 6, kind: input, shape index: {}]
  %s7 = inlined_call_operand.vmem [shape: bf16[128,128], index: 7, kind: input, shape index: {}]
  %s8 = inlined_call_operand.vmem [shape: f32[1,128], index: 8, kind: input, shape index: {}]
  %s9 = inlined_call_operand.hbm [shape: f32[16,128], index: 9, kind: output, shape index: {}]
  %s10 = sld [smem:[#allocation0]]
  $region46: #{mlp_forward.1} parent=0
    _
  %s12 = ssub.s32 1, %s10
  %s13 = scalar_select 0, %s12, %s10
  $region1: #{mlp_forward.1} parent=0
    #allocation2 [shape = 'u8[8192]{0}', space=vmem, size = 0x2000, scoped, tag = 'output window, operand 0, single buffered']
    #allocation3 [shape = 's32[1]{0}', space=sflag, size = 0x4, scoped, tag = 'scoped memory for mlp_forward.1']
    %14 = vsyncpa [#allocation3], 0
    // Predicated region
    $region2: #{mlp_forward.1} parent=1 // pred_check
      _
    $region3: #{mlp_forward.1} parent=1 // pred_check_branch
      %16 = sbr.rel (0) target = $region5
    $region4: #{mlp_forward.1} parent=1 // pred_region
      _
    $region5: #{mlp_forward.1} parent=1 // pred_fallthru
      _
    // Predicated region
    $region6: #{mlp_forward.1} parent=1 // pred_check
      _
    $region7: #{mlp_forward.1} parent=1 // pred_check_branch
      %18 = sbr.rel (0) target = $region9
    $region8: #{mlp_forward.1} parent=1 // pred_region
      _
    $region9: #{mlp_forward.1} parent=1 // pred_fallthru
      _
    // Predicated region
    $region10: #{mlp_forward.1} parent=1 // pred_check
      _
    $region11: #{mlp_forward.1} parent=1 // pred_check_branch
      %20 = sbr.rel (0) target = $region13
    $region12: #{mlp_forward.1} parent=1 // pred_region
      _
    $region13: #{mlp_forward.1} parent=1 // pred_fallthru
      _
    // Predicated region
    $region14: #{mlp_forward.1} parent=1 // pred_check
      _
    $region15: #{mlp_forward.1} parent=1 // pred_check_branch
      %22 = sbr.rel (0) target = $region17
    $region16: #{mlp_forward.1} parent=1 // pred_region
      _
    $region17: #{mlp_forward.1} parent=1 // pred_fallthru
      _
    // Predicated region
    $region18: #{mlp_forward.1} parent=1 // pred_check
      _
    $region19: #{mlp_forward.1} parent=1 // pred_check_branch
      %24 = sbr.rel (0) target = $region21
    $region20: #{mlp_forward.1} parent=1 // pred_region
      _
    $region21: #{mlp_forward.1} parent=1 // pred_fallthru
      _
    // Predicated region
    $region22: #{mlp_forward.1} parent=1 // pred_check
      _
    $region23: #{mlp_forward.1} parent=1 // pred_check_branch
      %26 = sbr.rel (0) target = $region25
    $region24: #{mlp_forward.1} parent=1 // pred_region
      _
    $region25: #{mlp_forward.1} parent=1 // pred_fallthru
      _
    // Predicated region
    $region26: #{mlp_forward.1} parent=1 // pred_check
      _
    $region27: #{mlp_forward.1} parent=1 // pred_check_branch
      %28 = sbr.rel (0) target = $region29
    $region28: #{mlp_forward.1} parent=1 // pred_region
      _
    $region29: #{mlp_forward.1} parent=1 // pred_fallthru
      _
    // Predicated region
    $region30: #{mlp_forward.1} parent=1 // pred_check
      _
    $region31: #{mlp_forward.1} parent=1 // pred_check_branch
      %30 = sbr.rel (0) target = $region33
    $region32: #{mlp_forward.1} parent=1 // pred_region
      _
    $region33: #{mlp_forward.1} parent=1 // pred_fallthru
      _
    // Predicated region
    $region34: #{mlp_forward.1} parent=1 // pred_check
      _
    $region35: #{mlp_forward.1} parent=1 // pred_check_branch
      %32 = sbr.rel (0) target = $region37
    $region36: #{mlp_forward.1} parent=1 // pred_region
      _
    $region37: #{mlp_forward.1} parent=1 // pred_fallthru
      _
    %v34 = vld [vmem:[%s0] sm:$0xf]
    %v35 = vld [vmem:[%s0 + $0x4] sm:$0xf]
    %v36 = vld [vmem:[%s1] sm:$0xf]
    %v37 = vld [vmem:[%s1 + $0x4] sm:$0xf]
    %v38 = vld [vmem:[%s1 + $0x8] sm:$0xf]
    %v39 = vld [vmem:[%s1 + $0xc] sm:$0xf]
    %v40 = vld [vmem:[%s1 + $0x10] sm:$0xf]
    %v41 = vld [vmem:[%s1 + $0x14] sm:$0xf]
    %v42 = vld [vmem:[%s1 + $0x18] sm:$0xf]
    %v43 = vld [vmem:[%s1 + $0x1c] sm:$0xf]
    %v44 = vld [vmem:[%s1 + $0x20] sm:$0xf]
    %v45 = vld [vmem:[%s1 + $0x24] sm:$0xf]
    %v46 = vld [vmem:[%s1 + $0x28] sm:$0xf]
    %v47 = vld [vmem:[%s1 + $0x2c] sm:$0xf]
    %v48 = vld [vmem:[%s1 + $0x30] sm:$0xf]
    %v49 = vld [vmem:[%s1 + $0x34] sm:$0xf]
    %v50 = vld [vmem:[%s1 + $0x38] sm:$0xf]
    %v51 = vld [vmem:[%s1 + $0x3c] sm:$0xf]
    %v54 = vunpack.c.l.b16 %v34
    %v55 = vunpack.c.l.b16 %v35
    %v56 = vpack.c.b16 %v55, %v54
    %v74 = vunpack.c.l.b16 %v36
    %v75 = vunpack.c.l.b16 %v37
    %v76 = vunpack.c.l.b16 %v38
    %v77 = vunpack.c.l.b16 %v39
    %v78 = vunpack.c.l.b16 %v40
    %v79 = vunpack.c.l.b16 %v41
    %v80 = vunpack.c.l.b16 %v42
    %v81 = vunpack.c.l.b16 %v43
    %v82 = vunpack.c.l.b16 %v44
    %v83 = vunpack.c.l.b16 %v45
    %v84 = vunpack.c.l.b16 %v46
    %v85 = vunpack.c.l.b16 %v47
    %v86 = vunpack.c.l.b16 %v48
    %v87 = vunpack.c.l.b16 %v49
    %v88 = vunpack.c.l.b16 %v50
    %v89 = vunpack.c.l.b16 %v51
    %v90 = vpack.c.b16 %v75, %v74
    %v91 = vpack.c.b16 %v77, %v76
    %v92 = vpack.c.b16 %v79, %v78
    %v93 = vpack.c.b16 %v81, %v80
    %v94 = vpack.c.b16 %v83, %v82
    %v95 = vpack.c.b16 %v85, %v84
    %v96 = vpack.c.b16 %v87, %v86
    %v97 = vpack.c.b16 %v89, %v88
    %106 = vmatprep.subr.bf16.mxu0 0
    %107 = vmatpush1.bf16.msra.mxu0 %v90
    %108 = vmatprep.subr.bf16.mxu0 0
    %109 = vmatpush1.bf16.msra.mxu0 %v91
    %110 = vmatprep.subr.bf16.mxu0 0
    %111 = vmatpush1.bf16.msra.mxu0 %v92
    %112 = vmatprep.subr.bf16.mxu0 0
    %113 = vmatpush1.bf16.msra.mxu0 %v93
    %114 = vmatprep.subr.bf16.mxu0 0
    %115 = vmatpush1.bf16.msra.mxu0 %v94
    %116 = vmatprep.subr.bf16.mxu0 0
    %117 = vmatpush1.bf16.msra.mxu0 %v95
    %118 = vmatprep.subr.bf16.mxu0 0
    %119 = vmatpush1.bf16.msra.mxu0 %v96
    %120 = vmatprep.subr.bf16.mxu0 0
    %121 = vmatpush1.bf16.msra.mxu0 %v97
    %122 = vmatprep.subr.bf16.mxu0 0
    %123 = vmatpush1.bf16.msra.mxu0 0
    %124 = vmatprep.subr.bf16.mxu0 0
    %125 = vmatpush1.bf16.msra.mxu0 0
    %126 = vmatprep.subr.bf16.mxu0 0
    %127 = vmatpush1.bf16.msra.mxu0 0
    %128 = vmatprep.subr.bf16.mxu0 0
    %129 = vmatpush1.bf16.msra.mxu0 0
    %130 = vmatprep.subr.bf16.mxu0 0
    %131 = vmatpush1.bf16.msra.mxu0 0
    %132 = vmatprep.subr.bf16.mxu0 0
    %133 = vmatpush1.bf16.msra.mxu0 0
    %134 = vmatprep.subr.bf16.mxu0 0
    %135 = vmatpush1.bf16.msra.mxu0 0
    %136 = vmatprep.subr.bf16.mxu0 0
    %137 = vmatpush1.bf16.msra.mxu0 0
    %138 = vmatprep.mubr.bf16.mxu0 0
    %139 = vmatmul.mubr.bf16.gmra.mrb[0].mxu0 %v56
    %v140 = vpop.f32.mrb[0].mxu0
    %v141 = vadd.f32 0.0, %v140
    %v142 = vpop.f32.mrb[0].mxu0
    %v143 = vpop.f32.mrb[0].mxu0
    %v144 = vadd.f32 0.0, %v143
    %v145 = vpop.f32.mrb[0].mxu0
    %146 = vdwg.mxu0
    %v147 = vld [vmem:[%s2] sm:$0x1]
    %v148 = vld [vmem:[%s3] sm:$0x1]
    %149 = vadd.xlane.f32.xlu0 %v141
    %v150 = vpop.xlane.xlu0 %149
    %151 = vadd.xlane.f32.xlu0 %v144
    %v152 = vpop.xlane.xlu0 %151
    %v153 = vmul.f32 %v150, 0.015625
    %v154 = vmul.f32 %v152, 0.015625
    %v155 = vmul.f32 %v141, %v141
    %v156 = vmul.f32 %v144, %v144
    %157 = vadd.xlane.f32.xlu0 %v155
    %v158 = vpop.xlane.xlu0 %157
    %159 = vadd.xlane.f32.xlu0 %v156
    %v160 = vpop.xlane.xlu0 %159
    %v161 = vmul.f32 %v158, 0.015625
    %v162 = vmul.f32 %v160, 0.015625
    %v163 = vmul.f32 %v153, %v153
    %v164 = vmul.f32 %v154, %v154
    %v165 = vsub.f32 %v161, %v163
    %v166 = vsub.f32 %v162, %v164
    %v167 = vsub.f32 %v141, %v153
    %v168 = vsub.f32 %v144, %v154
    %v169 = vadd.f32 %v165, 0.001
    %v170 = vadd.f32 %v166, 0.001
    %v171 = vrsqrt.pop %v169
    %v172 = vrsqrt.pop %v170
    %v173 = vmul.f32 %v167, %v171
    %v174 = vmul.f32 %v168, %v172
    %v176 = vlaneseq
    %v177 = vshrl.u32 %v176, 7
    %v178 = vsub.s32 0, %v177
    %v179 = vrot.slane %v147, %v178
    %v181 = vmul.f32 %v173, %v179
    %v182 = vmul.f32 %v174, %v179
    %v184 = vlaneseq
    %v185 = vshrl.u32 %v184, 7
    %v186 = vsub.s32 0, %v185
    %v187 = vrot.slane %v148, %v186
    %v189 = vadd.f32 %v181, %v187
    %v190 = vadd.f32 %v182, %v187
    %v191 = vxor.u32 %v189, 2147483648
    %v192 = vxor.u32 %v190, 2147483648
    %v193 = vmul.f32 %v191, 1.442695
    %v194 = vpow.pop %v193
    %v195 = vmul.f32 %v192, 1.442695
    %v196 = vpow.pop %v195
    %v197 = vadd.f32 %v194, 1.0
    %v198 = vadd.f32 %v196, 1.0
    %v199 = vrcp.pop %v197
    %v200 = vmul.f32 1.0, %v199
    %v201 = vrcp.pop %v198
    %v202 = vmul.f32 1.0, %v201
    %v203 = vmul.f32 %v189, %v200
    %v204 = vmul.f32 %v190, %v202
    %v205 = vpack.c.bf16 %v204, %v203
    %v206 = vld [vmem:[%s4] sm:$0xf]
    %v207 = vld [vmem:[%s4 + $0x4] sm:$0xf]
    %v208 = vld [vmem:[%s4 + $0x8] sm:$0xf]
    %v209 = vld [vmem:[%s4 + $0xc] sm:$0xf]
    %v210 = vld [vmem:[%s4 + $0x10] sm:$0xf]
    %v211 = vld [vmem:[%s4 + $0x14] sm:$0xf]
    %v212 = vld [vmem:[%s4 + $0x18] sm:$0xf]
    %v213 = vld [vmem:[%s4 + $0x1c] sm:$0xf]
    %v214 = vld [vmem:[%s4 + $0x20] sm:$0xf]
    %v215 = vld [vmem:[%s4 + $0x24] sm:$0xf]
    %v216 = vld [vmem:[%s4 + $0x28] sm:$0xf]
    %v217 = vld [vmem:[%s4 + $0x2c] sm:$0xf]
    %v218 = vld [vmem:[%s4 + $0x30] sm:$0xf]
    %v219 = vld [vmem:[%s4 + $0x34] sm:$0xf]
    %v220 = vld [vmem:[%s4 + $0x38] sm:$0xf]
    %v221 = vld [vmem:[%s4 + $0x3c] sm:$0xf]
    %v238 = vunpack.c.l.b16 %v206
    %v239 = vunpack.c.l.b16 %v207
    %v240 = vunpack.c.l.b16 %v208
    %v241 = vunpack.c.l.b16 %v209
    %v242 = vunpack.c.l.b16 %v210
    %v243 = vunpack.c.l.b16 %v211
    %v244 = vunpack.c.l.b16 %v212
    %v245 = vunpack.c.l.b16 %v213
    %v246 = vunpack.c.l.b16 %v214
    %v247 = vunpack.c.l.b16 %v215
    %v248 = vunpack.c.l.b16 %v216
    %v249 = vunpack.c.l.b16 %v217
    %v250 = vunpack.c.l.b16 %v218
    %v251 = vunpack.c.l.b16 %v219
    %v252 = vunpack.c.l.b16 %v220
    %v253 = vunpack.c.l.b16 %v221
    %v254 = vpack.c.b16 %v239, %v238
    %v255 = vpack.c.b16 %v241, %v240
    %v256 = vpack.c.b16 %v243, %v242
    %v257 = vpack.c.b16 %v245, %v244
    %v258 = vpack.c.b16 %v247, %v246
    %v259 = vpack.c.b16 %v249, %v248
    %v260 = vpack.c.b16 %v251, %v250
    %v261 = vpack.c.b16 %v253, %v252
    %270 = vmatprep.subr.bf16.mxu0 0
    %271 = vmatpush1.bf16.msra.mxu0 %v254
    %272 = vmatprep.subr.bf16.mxu0 0
    %273 = vmatpush1.bf16.msra.mxu0 %v255
    %274 = vmatprep.subr.bf16.mxu0 0
    %275 = vmatpush1.bf16.msra.mxu0 %v256
    %276 = vmatprep.subr.bf16.mxu0 0
    %277 = vmatpush1.bf16.msra.mxu0 %v257
    %278 = vmatprep.subr.bf16.mxu0 0
    %279 = vmatpush1.bf16.msra.mxu0 %v258
    %280 = vmatprep.subr.bf16.mxu0 0
    %281 = vmatpush1.bf16.msra.mxu0 %v259
    %282 = vmatprep.subr.bf16.mxu0 0
    %283 = vmatpush1.bf16.msra.mxu0 %v260
    %284 = vmatprep.subr.bf16.mxu0 0
    %285 = vmatpush1.bf16.msra.mxu0 %v261
    %286 = vmatprep.subr.bf16.mxu0 0
    %287 = vmatpush1.bf16.msra.mxu0 0
    %288 = vmatprep.subr.bf16.mxu0 0
    %289 = vmatpush1.bf16.msra.mxu0 0
    %290 = vmatprep.subr.bf16.mxu0 0
    %291 = vmatpush1.bf16.msra.mxu0 0
    %292 = vmatprep.subr.bf16.mxu0 0
    %293 = vmatpush1.bf16.msra.mxu0 0
    %294 = vmatprep.subr.bf16.mxu0 0
    %295 = vmatpush1.bf16.msra.mxu0 0
    %296 = vmatprep.subr.bf16.mxu0 0
    %297 = vmatpush1.bf16.msra.mxu0 0
    %298 = vmatprep.subr.bf16.mxu0 0
    %299 = vmatpush1.bf16.msra.mxu0 0
    %300 = vmatprep.subr.bf16.mxu0 0
    %301 = vmatpush1.bf16.msra.mxu0 0
    %302 = vmatprep.mubr.bf16.mxu0 0
    %303 = vmatmul.mubr.bf16.gmra.mrb[0].mxu0 %v205
    %v304 = vpop.f32.mrb[0].mxu0
    %v305 = vadd.f32 0.0, %v304
    %v306 = vpop.f32.mrb[0].mxu0
    %v307 = vpop.f32.mrb[0].mxu0
    %v308 = vadd.f32 0.0, %v307
    %v309 = vpop.f32.mrb[0].mxu0
    %310 = vdwg.mxu0
    %v311 = vld [vmem:[%s5] sm:$0x1]
    %v312 = vld [vmem:[%s6] sm:$0x1]
    %313 = vadd.xlane.f32.xlu0 %v305
    %v314 = vpop.xlane.xlu0 %313
    %315 = vadd.xlane.f32.xlu0 %v308
    %v316 = vpop.xlane.xlu0 %315
    %v317 = vmul.f32 %v314, 0.015625
    %v318 = vmul.f32 %v316, 0.015625
    %v319 = vmul.f32 %v305, %v305
    %v320 = vmul.f32 %v308, %v308
    %321 = vadd.xlane.f32.xlu0 %v319
    %v322 = vpop.xlane.xlu0 %321
    %323 = vadd.xlane.f32.xlu0 %v320
    %v324 = vpop.xlane.xlu0 %323
    %v325 = vmul.f32 %v322, 0.015625
    %v326 = vmul.f32 %v324, 0.015625
    %v327 = vmul.f32 %v317, %v317
    %v328 = vmul.f32 %v318, %v318
    %v329 = vsub.f32 %v325, %v327
    %v330 = vsub.f32 %v326, %v328
    %v331 = vsub.f32 %v305, %v317
    %v332 = vsub.f32 %v308, %v318
    %v333 = vadd.f32 %v329, 0.001
    %v334 = vadd.f32 %v330, 0.001
    %v335 = vrsqrt.pop %v333
    %v336 = vrsqrt.pop %v334
    %v337 = vmul.f32 %v331, %v335
    %v338 = vmul.f32 %v332, %v336
    %v340 = vlaneseq
    %v341 = vshrl.u32 %v340, 7
    %v342 = vsub.s32 0, %v341
    %v343 = vrot.slane %v311, %v342
    %v345 = vmul.f32 %v337, %v343
    %v346 = vmul.f32 %v338, %v343
    %v348 = vlaneseq
    %v349 = vshrl.u32 %v348, 7
    %v350 = vsub.s32 0, %v349
    %v351 = vrot.slane %v312, %v350
    %v353 = vadd.f32 %v345, %v351
    %v354 = vadd.f32 %v346, %v351
    %v355 = vxor.u32 %v353, 2147483648
    %v356 = vxor.u32 %v354, 2147483648
    %v357 = vmul.f32 %v355, 1.442695
    %v358 = vpow.pop %v357
    %v359 = vmul.f32 %v356, 1.442695
    %v360 = vpow.pop %v359
    %v361 = vadd.f32 %v358, 1.0
    %v362 = vadd.f32 %v360, 1.0
    %v363 = vrcp.pop %v361
    %v364 = vmul.f32 1.0, %v363
    %v365 = vrcp.pop %v362
    %v366 = vmul.f32 1.0, %v365
    %v367 = vmul.f32 %v353, %v364
    %v368 = vmul.f32 %v354, %v366
    %v369 = vpack.c.bf16 %v368, %v367
    %v370 = vld [vmem:[%s7] sm:$0xf]
    %v371 = vld [vmem:[%s7 + $0x4] sm:$0xf]
    %v372 = vld [vmem:[%s7 + $0x8] sm:$0xf]
    %v373 = vld [vmem:[%s7 + $0xc] sm:$0xf]
    %v374 = vld [vmem:[%s7 + $0x10] sm:$0xf]
    %v375 = vld [vmem:[%s7 + $0x14] sm:$0xf]
    %v376 = vld [vmem:[%s7 + $0x18] sm:$0xf]
    %v377 = vld [vmem:[%s7 + $0x1c] sm:$0xf]
    %v378 = vld [vmem:[%s7 + $0x20] sm:$0xf]
    %v379 = vld [vmem:[%s7 + $0x24] sm:$0xf]
    %v380 = vld [vmem:[%s7 + $0x28] sm:$0xf]
    %v381 = vld [vmem:[%s7 + $0x2c] sm:$0xf]
    %v382 = vld [vmem:[%s7 + $0x30] sm:$0xf]
    %v383 = vld [vmem:[%s7 + $0x34] sm:$0xf]
    %v384 = vld [vmem:[%s7 + $0x38] sm:$0xf]
    %v385 = vld [vmem:[%s7 + $0x3c] sm:$0xf]
    %v386 = vld [vmem:[%s8] sm:$0x1]
    %v388 = vlaneseq
    %v389 = vshrl.u32 %v388, 7
    %v390 = vsub.s32 0, %v389
    %v391 = vrot.slane %v386, %v390
    %v409 = vunpack.c.l.b16 %v370
    %v410 = vunpack.c.l.b16 %v371
    %v411 = vunpack.c.l.b16 %v372
    %v412 = vunpack.c.l.b16 %v373
    %v413 = vunpack.c.l.b16 %v374
    %v414 = vunpack.c.l.b16 %v375
    %v415 = vunpack.c.l.b16 %v376
    %v416 = vunpack.c.l.b16 %v377
    %v417 = vunpack.c.l.b16 %v378
    %v418 = vunpack.c.l.b16 %v379
    %v419 = vunpack.c.l.b16 %v380
    %v420 = vunpack.c.l.b16 %v381
    %v421 = vunpack.c.l.b16 %v382
    %v422 = vunpack.c.l.b16 %v383
    %v423 = vunpack.c.l.b16 %v384
    %v424 = vunpack.c.l.b16 %v385
    %v425 = vpack.c.b16 %v410, %v409
    %v426 = vpack.c.b16 %v412, %v411
    %v427 = vpack.c.b16 %v414, %v413
    %v428 = vpack.c.b16 %v416, %v415
    %v429 = vpack.c.b16 %v418, %v417
    %v430 = vpack.c.b16 %v420, %v419
    %v431 = vpack.c.b16 %v422, %v421
    %v432 = vpack.c.b16 %v424, %v423
    %441 = vmatprep.subr.bf16.mxu0 0
    %442 = vmatpush1.bf16.msra.mxu0 %v425
    %443 = vmatprep.subr.bf16.mxu0 0
    %444 = vmatpush1.bf16.msra.mxu0 %v426
    %445 = vmatprep.subr.bf16.mxu0 0
    %446 = vmatpush1.bf16.msra.mxu0 %v427
    %447 = vmatprep.subr.bf16.mxu0 0
    %448 = vmatpush1.bf16.msra.mxu0 %v428
    %449 = vmatprep.subr.bf16.mxu0 0
    %450 = vmatpush1.bf16.msra.mxu0 %v429
    %451 = vmatprep.subr.bf16.mxu0 0
    %452 = vmatpush1.bf16.msra.mxu0 %v430
    %453 = vmatprep.subr.bf16.mxu0 0
    %454 = vmatpush1.bf16.msra.mxu0 %v431
    %455 = vmatprep.subr.bf16.mxu0 0
    %456 = vmatpush1.bf16.msra.mxu0 %v432
    %457 = vmatprep.subr.bf16.mxu0 0
    %458 = vmatpush1.bf16.msra.mxu0 0
    %459 = vmatprep.subr.bf16.mxu0 0
    %460 = vmatpush1.bf16.msra.mxu0 0
    %461 = vmatprep.subr.bf16.mxu0 0
    %462 = vmatpush1.bf16.msra.mxu0 0
    %463 = vmatprep.subr.bf16.mxu0 0
    %464 = vmatpush1.bf16.msra.mxu0 0
    %465 = vmatprep.subr.bf16.mxu0 0
    %466 = vmatpush1.bf16.msra.mxu0 0
    %467 = vmatprep.subr.bf16.mxu0 0
    %468 = vmatpush1.bf16.msra.mxu0 0
    %469 = vmatprep.subr.bf16.mxu0 0
    %470 = vmatpush1.bf16.msra.mxu0 0
    %471 = vmatprep.subr.bf16.mxu0 0
    %472 = vmatpush1.bf16.msra.mxu0 0
    %473 = vmatprep.mubr.bf16.mxu0 0
    %474 = vmatmul.mubr.bf16.gmra.mrb[0].mxu0 %v369
    %v475 = vpop.f32.mrb[0].mxu0
    %v476 = vadd.f32 %v391, %v475
    %v477 = vpop.f32.mrb[0].mxu0
    %v478 = vpop.f32.mrb[0].mxu0
    %v479 = vadd.f32 %v391, %v478
    %v480 = vpop.f32.mrb[0].mxu0
    %481 = vdwg.mxu0
    %v482 = vtanh.pop %v476
    %v483 = vtanh.pop %v479
    %484 = vst [vmem:[#allocation2] sm:$0xff] %v482
    %485 = vst [vmem:[#allocation2 + $0x8] sm:$0xff] %v483
    // Predicated region
    $region38: #{mlp_forward.1} parent=1 // pred_check
      _
    $region39: #{mlp_forward.1} parent=1 // pred_check_branch
      %487 = sbr.rel (0) target = $region41
    $region40: #{mlp_forward.1} parent=1 // pred_region
      %s489 = ssub.s32 256, 256
      %490 = vsyncadd [#allocation3], %s489
      %s491 = sshll.u32 [#allocation2], 4
      %s492 = int_to_ptr.vmem [resolvable:$true] %s491
      %497 = dma.vmem_to_hbm [thread:$0]  %s492, 256, %s9, [#allocation3], 128, 128, 8
    $region41: #{mlp_forward.1} parent=1 // pred_fallthru
      _
    // Predicated region
    $region42: #{mlp_forward.1} parent=1 // pred_check
      _
    $region43: #{mlp_forward.1} parent=1 // pred_check_branch
      %499 = sbr.rel (0) target = $region45
    $region44: #{mlp_forward.1} parent=1 // pred_region
      %500 = dma.done [#allocation3], 256
    $region45: #{mlp_forward.1} parent=1 // pred_fallthru
      _
    %501 = vsyncpa [#allocation3], 1

</llo_original>
